<compile_context>
chip_gen: v6e
topology: v6e:2x2x1
jax: 0.10.0
libtpu: 0.0.40
codegen_flags: <defaults>
</compile_context>

<pallas_src>
from functools import partial

import jax
import jax.numpy as jnp
from jax.experimental import pallas as pl
from jax.experimental.pallas import tpu as pltpu

_LANE = 128              # lanes per vreg (last dim of every tile)
_MAX_BLOCK_ROWS = 1024   # rows per grid step: 1024*128 f32 = 512 KiB / block
_PALLAS_MIN_ELEMS = 1 << 14   # below this, fused XLA where beats a custom call


def _threshold_kernel(thr_ref, mean_ref, out_ref):
    # thr_ref: (2,) f32 in SMEM -> scalar broadcasts (read once per step).
    # mean_ref: (block_rows, 128) f32 VMEM tile; out_ref: same shape, int8.
    t1 = thr_ref[0]
    t2 = thr_ref[1]
    m = mean_ref[...]
    # (m >= t1) + (m >= t2) == 0/1/2 == low/mid/high (equivalent to the
    # reference nested branching for thr1 <= thr2, which the module guarantees).
    idx = (m >= t1).astype(jnp.int32) + (m >= t2).astype(jnp.int32)
    out_ref[...] = idx.astype(jnp.int8)


@partial(jax.jit, static_argnames=("block_rows",))
def _threshold_pallas(means_flat, thr, *, block_rows=_MAX_BLOCK_ROWS):
    """means_flat: (N,) f32, thr: (2,) f32 -> (N,) int8 (0=low, 1=mid, 2=high)."""
    n = means_flat.shape[0]

    # Pad only to a lane multiple (at most 127 elements); lane-aligned inputs
    # skip the copy entirely.  Row-dimension raggedness is handled by Pallas's
    # partial edge blocks, so no full-block padding / extra HBM copy is needed.
    rem = n % _LANE
    if rem:
        means_flat = jnp.pad(means_flat, (0, _LANE - rem))
    rows = means_flat.shape[0] // _LANE
    means_2d = means_flat.reshape(rows, _LANE)

    if rows <= block_rows:
        block_rows_eff = rows          # full-dim block: always a legal tiling
    else:
        # Non-full-dim blocks must satisfy f32 (8,128) and int8 (32,128) tiling.
        assert block_rows % 32 == 0, "block_rows must be a multiple of 32"
        block_rows_eff = block_rows
    n_blocks = pl.cdiv(rows, block_rows_eff)

    out = pl.pallas_call(
        _threshold_kernel,
        out_shape=jax.ShapeDtypeStruct((rows, _LANE), jnp.int8),
        grid=(n_blocks,),
        in_specs=[
            pl.BlockSpec(memory_space=pltpu.MemorySpace.SMEM),       # thresholds
            pl.BlockSpec((block_rows_eff, _LANE), lambda i: (i, 0)),  # means tile
        ],
        out_specs=pl.BlockSpec((block_rows_eff, _LANE), lambda i: (i, 0)),
        compiler_params=pltpu.CompilerParams(
            dimension_semantics=("parallel",)),   # shards blocks across v7x cores
    )(thr, means_2d)
    return out.reshape(-1)[:n]


@jax.jit
def _threshold_small(means_flat, thr):
    """Tiny-N / scalar path: fused XLA compare/add, no custom-call overhead."""
    t1 = thr[0]
    t2 = thr[1]
    idx = (means_flat >= t1).astype(jnp.int32) + (means_flat >= t2).astype(jnp.int32)
    return idx.astype(jnp.int8)


class ThresholdModule:
    """JAX/Pallas equivalent of the PyTorch ThresholdModule."""

    _NAMES = ("low", "mid", "high")

    def __init__(self, init_thr1=5500.0, init_thr2=9000.0):
        # Device-resident parameters, created once (matches nn.Parameter init).
        self._thr = jnp.asarray([init_thr1, init_thr2], jnp.float32)

    def category_indices(self, mean_vals):
        """Batched path: returns int8 category codes (0/1/2) on device."""
        means = jnp.asarray(mean_vals, jnp.float32).reshape(-1)
        if means.shape[0] < _PALLAS_MIN_ELEMS:
            return _threshold_small(means, self._thr)
        return _threshold_pallas(means, self._thr)

    def forward_batch(self, mean_vals):
        """Batched string output: one dispatch + one host sync for N inputs."""
        idx = jax.device_get(self.category_indices(mean_vals))
        return [self._NAMES[int(i)] for i in idx]

    def __call__(self, mean_val):
        # Spec-faithful scalar forward.  Returning a Python string forces one
        # device->host sync by design; prefer forward_batch / category_indices
        # for throughput.
        return self.forward_batch([mean_val])[0]


if __name__ == "__main__":
    root = jax.random.PRNGKey(0)
    k_a, k_b = jax.random.split(root, 2)
    mod = ThresholdModule()
    names = ThresholdModule._NAMES

    def ref_names(vals):
        return ["low" if v < 5500.0 else ("mid" if v < 9000.0 else "high")
                for v in vals]

    # 1) Pallas path, single lane-dense block: N = 16*128 = 2048 -> (16, 128).
    means_a = jax.random.uniform(k_a, (16 * _LANE,), jnp.float32,
                                 minval=0.0, maxval=12000.0)
    idx_a = jax.block_until_ready(_threshold_pallas(means_a, mod._thr))
    got_a = [names[int(i)] for i in jax.device_get(idx_a)]
    assert got_a == ref_names(jax.device_get(means_a).tolist())

    # 2) Pallas path, multi-block grid with a ragged tail: N = 333*128 + 59,
    #    block_rows=64 -> grid of 6 with a partial edge block (exercises the
    #    pad-free row handling at a small shape).
    n_b = 333 * _LANE + 59
    means_b = jax.random.uniform(k_b, (n_b,), jnp.float32,
                                 minval=0.0, maxval=12000.0)
    idx_b = jax.block_until_ready(
        _threshold_pallas(means_b, mod._thr, block_rows=64))
    got_b = [names[int(i)] for i in jax.device_get(idx_b)]
    assert len(got_b) == n_b
    assert got_b == ref_names(jax.device_get(means_b).tolist())

    # 3) Batched dispatcher + fixed sanity values (tiny -> fused XLA fast path).
    fixed = jnp.asarray([1000.0, 6000.0, 10000.0], jnp.float32)
    assert mod.forward_batch(fixed) == ["low", "mid", "high"]

    # 4) Spec-faithful scalar interface (matches the PyTorch forward exactly).
    assert mod(1000.0) == "low"
    assert mod(6000.0) == "mid"
    assert mod(10000.0) == "high"

    print("KERNEL_OK")
</pallas_src>

<mosaic_0001>
module attributes {stable_mosaic.version = 11 : i64} {
  func.func @_threshold_kernel(%arg0: i32, %arg1: memref<2xf32, #tpu.memory_space<smem>>, %arg2: memref<16x128xf32, #tpu.memory_space<vmem>>, %arg3: memref<16x128xi8, #tpu.memory_space<vmem>>) attributes {dimension_semantics = [#tpu.dimension_semantics<parallel>], iteration_bounds = array<i64: 1>, scalar_prefetch = 0 : i64, scratch_operands = 0 : i64, tpu.core_type = #tpu.core_type<tc>, window_params = [{transform_indices = @transform_0, window_bounds = array<i64: 2>}, {transform_indices = @transform_1, window_bounds = array<i64: 16, 128>}, {transform_indices = @transform_2, window_bounds = array<i64: 16, 128>}]} {
    %c0 = arith.constant 0 : index
    %0 = memref.load %arg1[%c0] : memref<2xf32, #tpu.memory_space<smem>>
    %c1 = arith.constant 1 : index
    %1 = memref.load %arg1[%c1] : memref<2xf32, #tpu.memory_space<smem>>
    %c0_0 = arith.constant 0 : index
    %c0_1 = arith.constant 0 : index
    %2 = vector.load %arg2[%c0_0, %c0_1] : memref<16x128xf32, #tpu.memory_space<vmem>>, vector<16x128xf32>
    %3 = vector.broadcast %0 : f32 to vector<16x128xf32>
    %4 = arith.cmpf oge, %2, %3 : vector<16x128xf32>
    %5 = arith.extui %4 : vector<16x128xi1> to vector<16x128xi32>
    %6 = vector.broadcast %1 : f32 to vector<16x128xf32>
    %7 = arith.cmpf oge, %2, %6 : vector<16x128xf32>
    %8 = arith.extui %7 : vector<16x128xi1> to vector<16x128xi32>
    %9 = arith.addi %5, %8 : vector<16x128xi32>
    %10 = arith.trunci %9 : vector<16x128xi32> to vector<16x128xi8>
    %c0_2 = arith.constant 0 : index
    %c0_3 = arith.constant 0 : index
    %11 = vector.load %arg3[%c0_2, %c0_3] : memref<16x128xi8, #tpu.memory_space<vmem>>, vector<16x128xi8>
    tpu.vector_store %arg3[%c0_2, %c0_3], %10 {strides = array<i32>} : memref<16x128xi8, #tpu.memory_space<vmem>>, vector<16x128xi8>,
    return
  }
  func.func @transform_0(%arg0: i32) -> i32 {
    %c0_i32 = arith.constant 0 : i32
    %c0_i32_0 = arith.constant 0 : i32
    return %c0_i32 : i32
  }
  func.func @transform_1(%arg0: i32) -> (i32, i32) {
    %c0_i32 = arith.constant 0 : i32
    %c0_i32_0 = arith.constant 0 : i32
    return %arg0, %c0_i32 : i32, i32
  }
  func.func @transform_2(%arg0: i32) -> (i32, i32) {
    %c0_i32 = arith.constant 0 : i32
    %c0_i32_0 = arith.constant 0 : i32
    return %arg0, %c0_i32 : i32, i32
  }
}

</mosaic_0001>

<llo_original>
// kernel: _threshold_pallas.1
$region0: #{_threshold_pallas.1}
  #allocation0 [shape = 'u32[]', space=smem, size = 0x4, offset = 0x4, fixed_abs, tag = 'smem constant byte address 0x4 - core index']
  #allocation1 [shape = 'u32[144,128]{1,0:T(1,128)}', space=vmem, size = 0x12000, scoped, tag = 'internal scratch']
  %s0 = inlined_call_operand.vmem [shape: f32[2], index: 0, kind: input, shape index: {}]
  %s1 = inlined_call_operand.hbm [shape: f32[16,128], index: 1, kind: input, shape index: {}]
  %s2 = inlined_call_operand.hbm [shape: s8[16,128], index: 2, kind: output, shape index: {}]
  %s3 = sld [smem:[#allocation0]]
  $region26: #{_threshold_pallas.1} parent=0
    _
  %s5 = ssub.s32 1, %s3
  %s6 = scalar_select 0, %s5, %s3
  $region1: #{_threshold_pallas.1} parent=0
    #allocation2 [shape = 'u8[512]{0}', space=smem, size = 0x200, scoped, tag = 'input window, operand 0, single buffered']
    #allocation3 [shape = 's32[1]{0}', space=sflag, size = 0x4, scoped, tag = 'scoped memory for _threshold_pallas.1']
    #allocation4 [shape = 's32[1]{0}', space=sflag, size = 0x4, scoped, tag = 'scoped memory for _threshold_pallas.1']
    #allocation5 [shape = 's32[1]{0}', space=sflag, size = 0x4, scoped, tag = 'scoped memory for _threshold_pallas.1']
    #allocation6 [shape = 'u8[8192]{0}', space=vmem, size = 0x2000, scoped, tag = 'input window, operand 1, single buffered']
    #allocation7 [shape = 'u8[2048]{0}', space=vmem, size = 0x800, scoped, tag = 'output window, operand 0, single buffered']
    %7 = vsyncpa [#allocation5], 0
    %8 = vsyncpa [#allocation3], 0
    %9 = vsyncpa [#allocation4], 0
    // Predicated region
    $region2: #{_threshold_pallas.1} parent=1 // pred_check
      _
    $region3: #{_threshold_pallas.1} parent=1 // pred_check_branch
      %11 = sbr.rel (0) target = $region5
    $region4: #{_threshold_pallas.1} parent=1 // pred_region
      %s13 = ssub.s32 16, 16
      %14 = vsyncadd [#allocation5], %s13
      %s16 = sshll.u32 %s0, 4
      %s17 = int_to_ptr.vmem [resolvable:$true] %s16
      %19 = dma.vmem_to_smem %s17, 16, [#allocation2], [#allocation5]
    $region5: #{_threshold_pallas.1} parent=1 // pred_fallthru
      _
    // Predicated region
    $region6: #{_threshold_pallas.1} parent=1 // pred_check
      _
    $region7: #{_threshold_pallas.1} parent=1 // pred_check_branch
      %21 = sbr.rel (0) target = $region9
    $region8: #{_threshold_pallas.1} parent=1 // pred_region
      %s23 = ssub.s32 256, 256
      %24 = vsyncadd [#allocation3], %s23
      %s25 = sshll.u32 [#allocation6], 4
      %s26 = int_to_ptr.vmem [resolvable:$true] %s25
      %31 = dma.hbm_to_vmem [thread:$0]  %s1, 256, %s26, [#allocation3], 128, 128, 8
    $region9: #{_threshold_pallas.1} parent=1 // pred_fallthru
      _
    // Predicated region
    $region10: #{_threshold_pallas.1} parent=1 // pred_check
      _
    $region11: #{_threshold_pallas.1} parent=1 // pred_check_branch
      %33 = sbr.rel (0) target = $region13
    $region12: #{_threshold_pallas.1} parent=1 // pred_region
      %34 = dma.done [#allocation5], 16
    $region13: #{_threshold_pallas.1} parent=1 // pred_fallthru
      _
    // Predicated region
    $region14: #{_threshold_pallas.1} parent=1 // pred_check
      _
    $region15: #{_threshold_pallas.1} parent=1 // pred_check_branch
      %36 = sbr.rel (0) target = $region17
    $region16: #{_threshold_pallas.1} parent=1 // pred_region
      %37 = dma.done [#allocation3], 256
    $region17: #{_threshold_pallas.1} parent=1 // pred_fallthru
      _
    %38 = sfence
    %s39 = sld [smem:[#allocation2]]
    %s40 = sld [smem:[#allocation2 + $0x1]]
    %v41 = vld [vmem:[#allocation6] sm:$0xff]
    %v42 = vld [vmem:[#allocation6 + $0x8] sm:$0xff]
    %v43 = vstv %s39
    %vm44 = vcmp.ge.f32.partialorder %v41, %v43
    %vm45 = vcmp.ge.f32.partialorder %v42, %v43
    %v46 = vsel %vm44, 1, 0
    %v47 = vsel %vm45, 1, 0
    %v48 = vstv %s40
    %vm49 = vcmp.ge.f32.partialorder %v41, %v48
    %vm50 = vcmp.ge.f32.partialorder %v42, %v48
    %v51 = vsel %vm49, 1, 0
    %v52 = vsel %vm50, 1, 0
    %v53 = vadd.s32 %v46, %v51
    %v54 = vadd.s32 %v47, %v52
    %v55 = vpack.c.b16 %v53, %v53
    %v56 = vpack.c.b8 %v55, %v55
    %v57 = vpack.c.b16 %v54, %v54
    %v58 = vpack.c.b8 %v57, %v57
    %59 = vst [vmem:[#allocation7] sm:$0x3] %v56
    %60 = vst [vmem:[#allocation7 + $0x2] sm:$0x3] %v58
    // Predicated region
    $region18: #{_threshold_pallas.1} parent=1 // pred_check
      _
    $region19: #{_threshold_pallas.1} parent=1 // pred_check_branch
      %62 = sbr.rel (0) target = $region21
    $region20: #{_threshold_pallas.1} parent=1 // pred_region
      %s64 = ssub.s32 64, 64
      %65 = vsyncadd [#allocation4], %s64
      %s66 = sshll.u32 [#allocation7], 4
      %s67 = int_to_ptr.vmem [resolvable:$true] %s66
      %72 = dma.vmem_to_hbm [thread:$0]  %s67, 64, %s2, [#allocation4], 32, 32, 2
    $region21: #{_threshold_pallas.1} parent=1 // pred_fallthru
      _
    // Predicated region
    $region22: #{_threshold_pallas.1} parent=1 // pred_check
      _
    $region23: #{_threshold_pallas.1} parent=1 // pred_check_branch
      %74 = sbr.rel (0) target = $region25
    $region24: #{_threshold_pallas.1} parent=1 // pred_region
      %75 = dma.done [#allocation4], 64
    $region25: #{_threshold_pallas.1} parent=1 // pred_fallthru
      _
    %76 = vsyncpa [#allocation3], 1
    %77 = vsyncpa [#allocation4], 1
    %78 = vsyncpa [#allocation5], 1

</llo_original>
